<compile_context>
chip_gen: v7x
topology: tpu7x:2x2x1
jax: 0.10.0
libtpu: 0.0.40
codegen_flags: <defaults>
</compile_context>

<pallas_src>
import jax
import jax.numpy as jnp
from jax.experimental import pallas as pl
from jax.experimental.pallas import tpu as pltpu


def _pair_hbm_copy_kernel(x_ref, t_ref, ox_ref, ot_ref, sem_x, sem_t):
    """Two whole-array HBM->HBM DMAs (search + template), started together so
    they overlap, then waited.  No VMEM round-trip, no vld/vst traffic."""
    cx = pltpu.make_async_copy(x_ref, ox_ref, sem_x)
    ct = pltpu.make_async_copy(t_ref, ot_ref, sem_t)
    cx.start()
    ct.start()
    cx.wait()
    ct.wait()


def _single_hbm_copy_kernel(x_ref, o_ref, sem):
    """One whole-array HBM->HBM DMA."""
    cp = pltpu.make_async_copy(x_ref, o_ref, sem)
    cp.start()
    cp.wait()


def _flat2d(x):
    """(N, C, D, H, W) -> (N*C*D, H*W): order-preserving collapse (free in
    XLA) so the kernel sees one contiguous 2D slab per feature map."""
    N, C, D, H, W = x.shape
    return x.reshape(N * C * D, H * W)


def height_compression_feature(x):
    """x: (N, C, D, H, W) -> (N, C*D, H, W) via a single HBM->HBM DMA."""
    N, C, D, H, W = x.shape
    flat = _flat2d(x)
    nbytes = flat.size * jnp.dtype(x.dtype).itemsize

    out_flat = pl.pallas_call(
        _single_hbm_copy_kernel,
        out_shape=jax.ShapeDtypeStruct(flat.shape, flat.dtype),
        in_specs=[pl.BlockSpec(memory_space=pl.ANY)],
        out_specs=pl.BlockSpec(memory_space=pl.ANY),
        scratch_shapes=[pltpu.SemaphoreType.DMA(())],
        cost_estimate=pl.CostEstimate(
            flops=0, transcendentals=0, bytes_accessed=2 * nbytes),
    )(flat)

    return out_flat.reshape(N, C * D, H, W)


def height_compression_pair(x, t):
    """Process search (x) and template (t) feature maps in one pallas_call."""
    Nx, Cx, Dx, Hx, Wx = x.shape
    Nt, Ct, Dt, Ht, Wt = t.shape
    flat_x = _flat2d(x)
    flat_t = _flat2d(t)
    bytes_x = flat_x.size * jnp.dtype(x.dtype).itemsize
    bytes_t = flat_t.size * jnp.dtype(t.dtype).itemsize

    out_x_flat, out_t_flat = pl.pallas_call(
        _pair_hbm_copy_kernel,
        out_shape=(
            jax.ShapeDtypeStruct(flat_x.shape, flat_x.dtype),
            jax.ShapeDtypeStruct(flat_t.shape, flat_t.dtype),
        ),
        in_specs=[
            pl.BlockSpec(memory_space=pl.ANY),
            pl.BlockSpec(memory_space=pl.ANY),
        ],
        out_specs=(
            pl.BlockSpec(memory_space=pl.ANY),
            pl.BlockSpec(memory_space=pl.ANY),
        ),
        scratch_shapes=[
            pltpu.SemaphoreType.DMA(()),
            pltpu.SemaphoreType.DMA(()),
        ],
        cost_estimate=pl.CostEstimate(
            flops=0, transcendentals=0, bytes_accessed=2 * (bytes_x + bytes_t)),
    )(flat_x, flat_t)

    return (out_x_flat.reshape(Nx, Cx * Dx, Hx, Wx),
            out_t_flat.reshape(Nt, Ct * Dt, Ht, Wt))


class HeightCompression:
    """JAX/Pallas port of the PyTorch HeightCompression module."""

    def __init__(self, num_bev_features):
        self.num_bev_features = num_bev_features

    def forward_feature(self, sparse_feature_dense):
        return height_compression_feature(sparse_feature_dense)

    def forward(self, batch_dict):
        spconv_x = batch_dict["search_sparse_features"]
        spconv_t = batch_dict["template_sparse_features"]
        # One launch for both feature maps (amortizes launch overhead).
        search_out, template_out = height_compression_pair(spconv_x, spconv_t)
        batch_dict["search_spatial_features"] = search_out
        batch_dict["template_spatial_features"] = template_out
        batch_dict["spatial_features_stride"] = batch_dict["spconv_downstride"]
        return batch_dict


if __name__ == "__main__":
    key = jax.random.PRNGKey(0)
    k_search, k_template = jax.random.split(key)

    # Small shapes: N=2, C=4, D=8, H=16, W=16 -> NUM_BEV_FEATURES = C*D = 32
    N, C, D, H, W = 2, 4, 8, 16, 16

    search_dense = jax.random.normal(k_search, (N, C, D, H, W), dtype=jnp.float32)
    template_dense = jax.random.normal(k_template, (N, C, D, H, W), dtype=jnp.float32)

    batch_dict = {
        "search_sparse_features": search_dense,
        "template_sparse_features": template_dense,
        "spconv_downstride": 8,
    }

    module = HeightCompression(num_bev_features=C * D)
    out_dict = module.forward(batch_dict)

    search_out = jax.block_until_ready(out_dict["search_spatial_features"])
    template_out = jax.block_until_ready(out_dict["template_spatial_features"])

    # Also exercise the single-feature path (forward_feature).
    single_out = jax.block_until_ready(module.forward_feature(search_dense))

    # Reference: torch .view(N, C*D, H, W) on contiguous NCDHW == jnp.reshape
    ref_search = jnp.reshape(search_dense, (N, C * D, H, W))
    ref_template = jnp.reshape(template_dense, (N, C * D, H, W))

    assert search_out.shape == (N, C * D, H, W)
    assert template_out.shape == (N, C * D, H, W)
    assert single_out.shape == (N, C * D, H, W)
    assert out_dict["spatial_features_stride"] == 8
    assert jnp.array_equal(search_out, ref_search)
    assert jnp.array_equal(template_out, ref_template)
    assert jnp.array_equal(single_out, ref_search)

    print("KERNEL_OK")
</pallas_src>

<mosaic_0001>
module attributes {stable_mosaic.version = 11 : i64} {
  func.func @_pair_hbm_copy_kernel(%arg0: memref<64x256xf32, #tpu.memory_space<any>>, %arg1: memref<64x256xf32, #tpu.memory_space<any>>, %arg2: memref<64x256xf32, #tpu.memory_space<any>>, %arg3: memref<64x256xf32, #tpu.memory_space<any>>, %arg4: memref<!tpu.dma_semaphore, #tpu.memory_space<semaphore_mem>>, %arg5: memref<!tpu.dma_semaphore, #tpu.memory_space<semaphore_mem>>) attributes {dimension_semantics = [], scalar_prefetch = 0 : i64, scratch_operands = 2 : i64, tpu.core_type = #tpu.core_type<tc>} {
    tpu.enqueue_dma source(%arg0 : memref<64x256xf32, #tpu.memory_space<any>>) target(%arg2 : memref<64x256xf32, #tpu.memory_space<any>>) target_semaphore(%arg4 : memref<!tpu.dma_semaphore, #tpu.memory_space<semaphore_mem>>)
    tpu.enqueue_dma source(%arg1 : memref<64x256xf32, #tpu.memory_space<any>>) target(%arg3 : memref<64x256xf32, #tpu.memory_space<any>>) target_semaphore(%arg5 : memref<!tpu.dma_semaphore, #tpu.memory_space<semaphore_mem>>)
    tpu.wait_dma2 semaphore(%arg4 : memref<!tpu.dma_semaphore, #tpu.memory_space<semaphore_mem>>) src(%arg0 : memref<64x256xf32, #tpu.memory_space<any>>) dst(%arg2 : memref<64x256xf32, #tpu.memory_space<any>>)
    tpu.wait_dma2 semaphore(%arg5 : memref<!tpu.dma_semaphore, #tpu.memory_space<semaphore_mem>>) src(%arg1 : memref<64x256xf32, #tpu.memory_space<any>>) dst(%arg3 : memref<64x256xf32, #tpu.memory_space<any>>)
    return
  }
}

</mosaic_0001>

<llo_original>
// kernel: tpu_custom_call.1
$region0: #{tpu_custom_call.1}
  #allocation0 [shape = 'u32[]', space=smem, size = 0x4, offset = 0x4, fixed_abs, tag = 'smem constant byte address 0x4 - core index']
  #allocation1 [shape = 'u32[144,128]{1,0:T(1,128)}', space=vmem, size = 0x12000, scoped, tag = 'internal scratch']
  #allocation2 [shape = 's32[1]{0}', space=sflag, size = 0x4, scoped, tag = 'scratch operand']
  #allocation3 [shape = 's32[1]{0}', space=sflag, size = 0x4, scoped, tag = 'scratch operand']
  #allocation4 [shape = 's32[]', space=sflag, size = 0x4, offset = 0, fixed_abs, tag = 'sflag constant byte address 0x0 - dummy sync flag']
  #allocation5 [shape = 'u32[0]{0}', space=smem, size = 0, offset = 0, fixed_abs, tag = 'smem constant byte address 0x0 - null']
  #allocation6 [shape = 's32[]', space=sflag, size = 0x4, offset = 0, fixed_abs, tag = 'sflag constant byte address 0x0 - dummy sync flag']
  #allocation7 [shape = 'u32[0]{0}', space=smem, size = 0, offset = 0, fixed_abs, tag = 'smem constant byte address 0x0 - null']
  %s0 = inlined_call_operand.hbm [shape: f32[64,256], index: 0, kind: input, shape index: {}]
  %s1 = inlined_call_operand.hbm [shape: f32[64,256], index: 1, kind: input, shape index: {}]
  %s2 = inlined_call_operand.hbm [shape: f32[64,256], index: 2, kind: output, shape index: {0}]
  %s3 = inlined_call_operand.hbm [shape: f32[64,256], index: 3, kind: output, shape index: {1}]
  %4 = xla_tuple %s2, %s3
  %s5 = sld [smem:[#allocation0]]
  $region2: #{tpu_custom_call.1} parent=0
    _
  %s7 = ssub.s32 1, %s5
  %s8 = scalar_select 0, %s7, %s5
  %s10 = sshll.u32 1, 14
  %s11 = sxor.u32 4294967295, %s10
  %s14 = sshll.u32 3, 24
  %s15 = sxor.u32 4294967295, %s14
  %s16 = sand.u32 0, %s15
  %s18 = sor.u32 %s16, 0
  %21 = dma.general %s0, 2048, %s2, [#allocation2], [#allocation4], [#allocation5], %s18, 0
  %s23 = sshll.u32 1, 14
  %s24 = sxor.u32 4294967295, %s23
  %s27 = sshll.u32 3, 24
  %s28 = sxor.u32 4294967295, %s27
  %s29 = sand.u32 0, %s28
  %s31 = sor.u32 %s29, 0
  %34 = dma.general %s1, 2048, %s3, [#allocation3], [#allocation6], [#allocation7], %s31, 0
  %s35 = smul.u32 8, 8
  %s36 = smul.u32 %s35, 2
  %s37 = sshll.u32 %s36, 4
  %38 = dma.done [#allocation2], %s37
  %s39 = sshll.u32 %s36, 4
  %40 = dma.done [#allocation3], %s39
  %41 = vsyncmov [#allocation2]
  %s42 = vpop.sfrf %41
  %p43 = scmp.eq.s32.totalorder %s42, 0
  %p44 = pneg %p43
  %46 = shalt.err (%p44)
  %47 = vsyncmov [#allocation3]
  %s48 = vpop.sfrf %47
  %p49 = scmp.eq.s32.totalorder %s48, 0
  %p50 = pneg %p49
  %52 = shalt.err (%p50)

</llo_original>
